<compile_context>
chip_gen: v7x
topology: tpu7x:2x2x1
jax: 0.10.0
libtpu: 0.0.40
codegen_flags: <defaults>
</compile_context>

<pallas_src>
import functools

import jax
import jax.numpy as jnp
from jax.experimental import pallas as pl
from jax.experimental.pallas import tpu as pltpu

IN_DIM = 128
DIM = 128
N_NODES = 16
N_EDGES = 24
N_GRAPHS = 2


def _elu(x):
    # ELU(alpha=1): x if x > 0 else exp(x) - 1   (exp arg clamped to avoid overflow)
    return jnp.where(x > 0, x, jnp.exp(jnp.minimum(x, 0.0)) - 1.0)


# --------------------------- fused forward kernel ----------------------------
def make_fused_kernel(num_graphs, num_nodes, dim):
    def kernel(x_ref, w_ref, consts_ref, src_ref, dst_ref, be_ref,
               atom_ref, mol_ref):
        # packed constants: row0 = linear bias, row1 = attn, row2 = readout w,
        #                   row3[0] = readout bias
        b = consts_ref[0:1, :]
        attn = consts_ref[1:2, :]
        wr = consts_ref[2:3, :]
        br = consts_ref[3:4, 0:1]

        # node-wise linear: single MXU pass, result stays on-chip
        h = jnp.dot(x_ref[...], w_ref[...],
                    preferred_element_type=jnp.float32) + b           # [N, dim]

        # folded src/dst gather: (onehot_src + onehot_dst) @ h == h_src + h_dst
        # selectors rebuilt in-kernel from int32 indices (no f32 selector DMAs)
        e = src_ref.shape[0]
        node_ids = jax.lax.broadcasted_iota(jnp.int32, (e, num_nodes), 1)
        sel_sum = ((node_ids == src_ref[...]).astype(jnp.float32)
                   + (node_ids == dst_ref[...]).astype(jnp.float32))  # [E, N]
        h_edge = jnp.dot(sel_sum, h,
                         preferred_element_type=jnp.float32,
                         precision=jax.lax.Precision.HIGHEST)         # [E, dim]

        atom = _elu(_elu(h_edge) * attn)                              # [E, dim]
        atom_ref[...] = atom

        # ReadoutPhase: score = sigmoid(Linear(dim,1)(atom)),
        # mol = [segment_sum(atom*score) ; segment_max(atom)]
        score = jax.nn.sigmoid(
            jnp.sum(atom * wr, axis=-1, keepdims=True) + br)          # [E, 1]
        weighted = atom * score

        be = be_ref[...]                                              # [E, 1] int32
        sums, maxs = [], []
        for g in range(num_graphs):                                   # static unroll, G tiny
            in_g = be == g                                            # [E, 1] bool
            sums.append(jnp.sum(jnp.where(in_g, weighted, 0.0),
                                axis=0, keepdims=True))               # [1, dim] exact f32
            maxs.append(jnp.max(jnp.where(in_g, atom, -jnp.inf),
                                axis=0, keepdims=True))               # [1, dim]
        # two lane-aligned 128-wide stores; no lane-axis concatenate
        mol_ref[:, 0:dim] = jnp.concatenate(sums, axis=0)             # [G, dim]
        mol_ref[:, dim:2 * dim] = jnp.concatenate(maxs, axis=0)       # [G, dim]

    return kernel


def fused_forward_pallas(x, w_t, consts, src, dst, batch_e, num_graphs):
    n = x.shape[0]
    e = src.shape[0]
    dim = w_t.shape[1]
    vmem = pl.BlockSpec(memory_space=pltpu.MemorySpace.VMEM)
    return pl.pallas_call(
        make_fused_kernel(num_graphs, n, dim),
        out_shape=(
            jax.ShapeDtypeStruct((e, dim), jnp.float32),
            jax.ShapeDtypeStruct((num_graphs, 2 * dim), jnp.float32),
        ),
        in_specs=[vmem] * 6,
        out_specs=(vmem, vmem),
    )(x, w_t, consts, src, dst, batch_e)


# ------------------------------ full forward ---------------------------------
@functools.partial(jax.jit, static_argnames=("num_graphs",))
def line_evo_forward(x, edges, pos, batch, params, num_graphs=N_GRAPHS):
    w_t, b2d, attn, wr, br = params
    dim = w_t.shape[1]
    # dropout: identity (inference)
    src = edges[:, 0].astype(jnp.int32)
    dst = edges[:, 1].astype(jnp.int32)
    batch_e = jnp.take(batch, src, axis=0).astype(jnp.int32)  # "batch" lifted to edges

    # pack small constants into a single [4, dim] block (one DMA descriptor)
    consts = jnp.concatenate(
        [b2d, attn, wr, jnp.pad(br, ((0, 0), (0, dim - 1)))], axis=0)

    atom_repr, mol_repr = fused_forward_pallas(
        x, w_t, consts, src[:, None], dst[:, None], batch_e[:, None], num_graphs)
    # if_pos=False -> pos returned unchanged
    return atom_repr, pos, batch_e, mol_repr


# ------------------------------ pure-JAX reference ---------------------------
def ref_forward(x, edges, pos, batch, params, num_graphs=N_GRAPHS):
    w_t, b2d, attn, wr, br = params
    h = x @ w_t + b2d
    hs = h[edges[:, 0]]
    hd = h[edges[:, 1]]
    e = _elu(hs + hd)
    atom = _elu(e * attn)
    be = batch[edges[:, 0]].astype(jnp.int32)
    score = jax.nn.sigmoid(atom @ wr.T + br)
    sums = jax.ops.segment_sum(atom * score, be, num_segments=num_graphs)
    maxs = jax.ops.segment_max(atom, be, num_segments=num_graphs)
    mol = jnp.concatenate([sums, maxs], axis=1)
    return atom, pos, be, mol


def init_params(key, in_dim=IN_DIM, dim=DIM):
    k1, k2, k3, k4 = jax.random.split(key, 4)
    # xavier_uniform for Linear(in_dim, dim) weight (stored transposed: [in_dim, dim])
    bound_w = (6.0 / (in_dim + dim)) ** 0.5
    w_t = jax.random.uniform(k1, (in_dim, dim), jnp.float32, -bound_w, bound_w)
    b2d = jnp.zeros((1, dim), jnp.float32)                  # zeros_ bias
    # xavier_uniform attn [1, dim]
    bound_a = (6.0 / (1 + dim)) ** 0.5
    attn = jax.random.uniform(k2, (1, dim), jnp.float32, -bound_a, bound_a)
    # ReadoutPhase weighting Linear(dim, 1): weight [1, dim], bias [1, 1]
    bound_r = (6.0 / (dim + 1)) ** 0.5
    wr = jax.random.uniform(k3, (1, dim), jnp.float32, -bound_r, bound_r)
    br = jax.random.uniform(k4, (1, 1), jnp.float32, -0.1, 0.1)
    return (w_t, b2d, attn, wr, br)


def build_edges_and_batch():
    # 2 graphs, 8 nodes each, 12 edges per graph (all edges stay within a graph)
    edges = []
    for g in range(N_GRAPHS):
        off = g * 8
        for i in range(8):
            edges.append((off + i, off + (i + 1) % 8))
        for i in range(4):
            edges.append((off + i, off + (i + 2) % 8))
    edges = jnp.array(edges, dtype=jnp.int32)               # [24, 2]
    batch = jnp.array([0] * 8 + [1] * 8, dtype=jnp.int32)   # [16]
    return edges, batch


if __name__ == "__main__":
    key = jax.random.PRNGKey(0)
    kx, kp, kparam = jax.random.split(key, 3)
    x = jax.random.normal(kx, (N_NODES, IN_DIM), jnp.float32)
    pos = jax.random.normal(kp, (N_NODES, 3), jnp.float32)
    edges, batch = build_edges_and_batch()
    params = init_params(kparam)

    atom_k, pos_k, batch_k, mol_k = line_evo_forward(x, edges, pos, batch, params)
    jax.block_until_ready((atom_k, pos_k, batch_k, mol_k))

    atom_r, pos_r, batch_r, mol_r = ref_forward(x, edges, pos, batch, params)

    assert atom_k.shape == (N_EDGES, DIM)
    assert mol_k.shape == (N_GRAPHS, 2 * DIM)
    assert jnp.allclose(atom_k, atom_r, atol=1e-4, rtol=1e-4)
    assert jnp.allclose(mol_k, mol_r, atol=1e-4, rtol=1e-4)
    assert jnp.array_equal(batch_k, batch_r)
    assert jnp.allclose(pos_k, pos_r)

    print("KERNEL_OK")
</pallas_src>

<mosaic_0001>
module attributes {stable_mosaic.version = 11 : i64} {
  func.func @kernel(%arg0: memref<16x128xf32, #tpu.memory_space<vmem>>, %arg1: memref<128x128xf32, #tpu.memory_space<vmem>>, %arg2: memref<4x128xf32, #tpu.memory_space<vmem>>, %arg3: memref<24x1xi32, #tpu.memory_space<vmem>>, %arg4: memref<24x1xi32, #tpu.memory_space<vmem>>, %arg5: memref<24x1xi32, #tpu.memory_space<vmem>>, %arg6: memref<24x128xf32, #tpu.memory_space<vmem>>, %arg7: memref<2x256xf32, #tpu.memory_space<vmem>>) attributes {dimension_semantics = [], scalar_prefetch = 0 : i64, scratch_operands = 0 : i64, tpu.core_type = #tpu.core_type<tc>} {
    %c0 = arith.constant 0 : index
    %c0_0 = arith.constant 0 : index
    %0 = vector.load %arg2[%c0, %c0_0] : memref<4x128xf32, #tpu.memory_space<vmem>>, vector<1x128xf32>
    %c1 = arith.constant 1 : index
    %c0_1 = arith.constant 0 : index
    %1 = vector.load %arg2[%c1, %c0_1] : memref<4x128xf32, #tpu.memory_space<vmem>>, vector<1x128xf32>
    %c2 = arith.constant 2 : index
    %c0_2 = arith.constant 0 : index
    %2 = vector.load %arg2[%c2, %c0_2] : memref<4x128xf32, #tpu.memory_space<vmem>>, vector<1x128xf32>
    %c3 = arith.constant 3 : index
    %c0_3 = arith.constant 0 : index
    %3 = vector.load %arg2[%c3, %c0_3] : memref<4x128xf32, #tpu.memory_space<vmem>>, vector<1x1xf32>
    %c0_4 = arith.constant 0 : index
    %c0_5 = arith.constant 0 : index
    %4 = vector.load %arg0[%c0_4, %c0_5] : memref<16x128xf32, #tpu.memory_space<vmem>>, vector<16x128xf32>
    %c0_6 = arith.constant 0 : index
    %c0_7 = arith.constant 0 : index
    %5 = vector.load %arg1[%c0_6, %c0_7] : memref<128x128xf32, #tpu.memory_space<vmem>>, vector<128x128xf32>
    %cst = arith.constant dense<0.000000e+00> : vector<16x128xf32>
    %6 = tpu.matmul %4, %5, %cst {dimension_numbers = #tpu.dot_dimension_numbers<[1], [0], [0], [1], [0, 0, 1, 1], [], []>} : vector<16x128xf32>, vector<128x128xf32>, vector<16x128xf32> -> vector<16x128xf32>
    %7 = vector.broadcast %0 : vector<1x128xf32> to vector<16x128xf32>
    %8 = arith.addf %6, %7 : vector<16x128xf32>
    %9 = tpu.iota {dimensions = array<i32: 1>} : vector<24x16xi32>
    %c0_8 = arith.constant 0 : index
    %c0_9 = arith.constant 0 : index
    %10 = vector.load %arg3[%c0_8, %c0_9] : memref<24x1xi32, #tpu.memory_space<vmem>>, vector<24x1xi32>
    %11 = vector.broadcast %10 : vector<24x1xi32> to vector<24x16xi32>
    %12 = arith.cmpi eq, %9, %11 : vector<24x16xi32>
    %13 = arith.extui %12 : vector<24x16xi1> to vector<24x16xi32>
    %14 = arith.sitofp %13 : vector<24x16xi32> to vector<24x16xf32>
    %c0_10 = arith.constant 0 : index
    %c0_11 = arith.constant 0 : index
    %15 = vector.load %arg4[%c0_10, %c0_11] : memref<24x1xi32, #tpu.memory_space<vmem>>, vector<24x1xi32>
    %16 = vector.broadcast %15 : vector<24x1xi32> to vector<24x16xi32>
    %17 = arith.cmpi eq, %9, %16 : vector<24x16xi32>
    %18 = arith.extui %17 : vector<24x16xi1> to vector<24x16xi32>
    %19 = arith.sitofp %18 : vector<24x16xi32> to vector<24x16xf32>
    %20 = arith.addf %14, %19 : vector<24x16xf32>
    %cst_12 = arith.constant dense<0.000000e+00> : vector<24x128xf32>
    %21 = tpu.matmul %20, %8, %cst_12 {dimension_numbers = #tpu.dot_dimension_numbers<[1], [0], [0], [1], [0, 0, 1, 1], [], []>, precision = #tpu.contract_precision<fp32>} : vector<24x16xf32>, vector<16x128xf32>, vector<24x128xf32> -> vector<24x128xf32>
    %cst_13 = arith.constant 0.000000e+00 : f32
    %22 = vector.broadcast %cst_13 : f32 to vector<24x128xf32>
    %23 = arith.cmpf ogt, %21, %22 : vector<24x128xf32>
    %cst_14 = arith.constant 0.000000e+00 : f32
    %24 = vector.broadcast %cst_14 : f32 to vector<24x128xf32>
    %25 = arith.minimumf %21, %24 : vector<24x128xf32>
    %26 = math.exp %25 : vector<24x128xf32>
    %cst_15 = arith.constant 1.000000e+00 : f32
    %27 = vector.broadcast %cst_15 : f32 to vector<24x128xf32>
    %28 = arith.subf %26, %27 : vector<24x128xf32>
    %29 = arith.select %23, %21, %28 : vector<24x128xi1>, vector<24x128xf32>
    %30 = vector.broadcast %1 : vector<1x128xf32> to vector<24x128xf32>
    %31 = arith.mulf %29, %30 : vector<24x128xf32>
    %cst_16 = arith.constant 0.000000e+00 : f32
    %32 = vector.broadcast %cst_16 : f32 to vector<24x128xf32>
    %33 = arith.cmpf ogt, %31, %32 : vector<24x128xf32>
    %cst_17 = arith.constant 0.000000e+00 : f32
    %34 = vector.broadcast %cst_17 : f32 to vector<24x128xf32>
    %35 = arith.minimumf %31, %34 : vector<24x128xf32>
    %36 = math.exp %35 : vector<24x128xf32>
    %cst_18 = arith.constant 1.000000e+00 : f32
    %37 = vector.broadcast %cst_18 : f32 to vector<24x128xf32>
    %38 = arith.subf %36, %37 : vector<24x128xf32>
    %39 = arith.select %33, %31, %38 : vector<24x128xi1>, vector<24x128xf32>
    %c0_19 = arith.constant 0 : index
    %c0_20 = arith.constant 0 : index
    %40 = vector.load %arg6[%c0_19, %c0_20] : memref<24x128xf32, #tpu.memory_space<vmem>>, vector<24x128xf32>
    tpu.vector_store %arg6[%c0_19, %c0_20], %39 {strides = array<i32>} : memref<24x128xf32, #tpu.memory_space<vmem>>, vector<24x128xf32>,
    %41 = vector.broadcast %2 : vector<1x128xf32> to vector<24x128xf32>
    %42 = arith.mulf %39, %41 : vector<24x128xf32>
    %cst_21 = arith.constant dense<0.000000e+00> : vector<24xf32>
    %43 = vector.multi_reduction <add>, %42, %cst_21 [1] : vector<24x128xf32> to vector<24xf32>
    %44 = vector.shape_cast %43 : vector<24xf32> to vector<24x1xf32>
    %45 = vector.broadcast %3 : vector<1x1xf32> to vector<24x1xf32>
    %46 = arith.addf %44, %45 : vector<24x1xf32>
    %47 = arith.negf %46 : vector<24x1xf32>
    %48 = math.exp %47 : vector<24x1xf32>
    %cst_22 = arith.constant 1.000000e+00 : f32
    %49 = vector.broadcast %cst_22 : f32 to vector<24x1xf32>
    %50 = arith.addf %49, %48 : vector<24x1xf32>
    %51 = arith.divf %49, %50 : vector<24x1xf32>
    %52 = vector.broadcast %51 : vector<24x1xf32> to vector<24x128xf32>
    %53 = arith.mulf %39, %52 : vector<24x128xf32>
    %c0_23 = arith.constant 0 : index
    %c0_24 = arith.constant 0 : index
    %54 = vector.load %arg5[%c0_23, %c0_24] : memref<24x1xi32, #tpu.memory_space<vmem>>, vector<24x1xi32>
    %c0_i32 = arith.constant 0 : i32
    %55 = vector.broadcast %c0_i32 : i32 to vector<24x1xi32>
    %56 = arith.cmpi eq, %54, %55 : vector<24x1xi32>
    %cst_25 = arith.constant 0.000000e+00 : f32
    %57 = vector.shape_cast %56 : vector<24x1xi1> to vector<24x1xi1>
    %58 = vector.broadcast %57 : vector<24x1xi1> to vector<24x128xi1>
    %59 = vector.broadcast %cst_25 : f32 to vector<24x128xf32>
    %60 = arith.select %58, %53, %59 : vector<24x128xi1>, vector<24x128xf32>
    %cst_26 = arith.constant dense<0.000000e+00> : vector<128xf32>
    %61 = vector.multi_reduction <add>, %60, %cst_26 [0] : vector<24x128xf32> to vector<128xf32>
    %62 = vector.shape_cast %61 : vector<128xf32> to vector<1x128xf32>
    %cst_27 = arith.constant 0xFF800000 : f32
    %63 = vector.shape_cast %56 : vector<24x1xi1> to vector<24x1xi1>
    %64 = vector.broadcast %63 : vector<24x1xi1> to vector<24x128xi1>
    %65 = vector.broadcast %cst_27 : f32 to vector<24x128xf32>
    %66 = arith.select %64, %39, %65 : vector<24x128xi1>, vector<24x128xf32>
    %cst_28 = arith.constant dense<0xFF800000> : vector<128xf32>
    %67 = vector.multi_reduction <maximumf>, %66, %cst_28 [0] : vector<24x128xf32> to vector<128xf32>
    %68 = vector.shape_cast %67 : vector<128xf32> to vector<1x128xf32>
    %c1_i32 = arith.constant 1 : i32
    %69 = vector.broadcast %c1_i32 : i32 to vector<24x1xi32>
    %70 = arith.cmpi eq, %54, %69 : vector<24x1xi32>
    %cst_29 = arith.constant 0.000000e+00 : f32
    %71 = vector.shape_cast %70 : vector<24x1xi1> to vector<24x1xi1>
    %72 = vector.broadcast %71 : vector<24x1xi1> to vector<24x128xi1>
    %73 = vector.broadcast %cst_29 : f32 to vector<24x128xf32>
    %74 = arith.select %72, %53, %73 : vector<24x128xi1>, vector<24x128xf32>
    %cst_30 = arith.constant dense<0.000000e+00> : vector<128xf32>
    %75 = vector.multi_reduction <add>, %74, %cst_30 [0] : vector<24x128xf32> to vector<128xf32>
    %76 = vector.shape_cast %75 : vector<128xf32> to vector<1x128xf32>
    %cst_31 = arith.constant 0xFF800000 : f32
    %77 = vector.shape_cast %70 : vector<24x1xi1> to vector<24x1xi1>
    %78 = vector.broadcast %77 : vector<24x1xi1> to vector<24x128xi1>
    %79 = vector.broadcast %cst_31 : f32 to vector<24x128xf32>
    %80 = arith.select %78, %39, %79 : vector<24x128xi1>, vector<24x128xf32>
    %cst_32 = arith.constant dense<0xFF800000> : vector<128xf32>
    %81 = vector.multi_reduction <maximumf>, %80, %cst_32 [0] : vector<24x128xf32> to vector<128xf32>
    %82 = vector.shape_cast %81 : vector<128xf32> to vector<1x128xf32>
    %83 = tpu.concatenate %62, %76 in 0 : vector<1x128xf32>, vector<1x128xf32> -> vector<2x128xf32>
    %c0_33 = arith.constant 0 : index
    %c0_34 = arith.constant 0 : index
    %84 = vector.load %arg7[%c0_33, %c0_34] : memref<2x256xf32, #tpu.memory_space<vmem>>, vector<2x128xf32>
    tpu.vector_store %arg7[%c0_33, %c0_34], %83 {strides = array<i32>} : memref<2x256xf32, #tpu.memory_space<vmem>>, vector<2x128xf32>,
    %85 = tpu.concatenate %68, %82 in 0 : vector<1x128xf32>, vector<1x128xf32> -> vector<2x128xf32>
    %c0_35 = arith.constant 0 : index
    %c128 = arith.constant 128 : index
    %86 = vector.load %arg7[%c0_35, %c128] : memref<2x256xf32, #tpu.memory_space<vmem>>, vector<2x128xf32>
    tpu.vector_store %arg7[%c0_35, %c128], %85 {strides = array<i32>} : memref<2x256xf32, #tpu.memory_space<vmem>>, vector<2x128xf32>,
    return
  }
}

</mosaic_0001>

<llo_original>
// kernel: line_evo_forward.1
$region0: #{line_evo_forward.1}
  #allocation0 [shape = 'u32[]', space=smem, size = 0x4, offset = 0x4, fixed_abs, tag = 'smem constant byte address 0x4 - core index']
  #allocation1 [shape = 'u32[144,128]{1,0:T(1,128)}', space=vmem, size = 0x12000, scoped, tag = 'internal scratch']
  %s0 = inlined_call_operand.vmem [shape: f32[16,128], index: 0, kind: input, shape index: {}]
  %s1 = inlined_call_operand.vmem [shape: f32[128,128], index: 1, kind: input, shape index: {}]
  %s2 = inlined_call_operand.vmem [shape: f32[4,128], index: 2, kind: input, shape index: {}]
  %s3 = inlined_call_operand.vmem [shape: s32[24,1], index: 3, kind: input, shape index: {}]
  %s4 = inlined_call_operand.vmem [shape: s32[24,1], index: 4, kind: input, shape index: {}]
  %s5 = inlined_call_operand.vmem [shape: s32[24,1], index: 5, kind: input, shape index: {}]
  %s6 = inlined_call_operand.hbm [shape: f32[24,128], index: 6, kind: output, shape index: {0}]
  %s7 = inlined_call_operand.hbm [shape: f32[2,256], index: 7, kind: output, shape index: {1}]
  %8 = xla_tuple %s6, %s7
  %s9 = sld [smem:[#allocation0]]
  $region42: #{line_evo_forward.1} parent=0
    _
  %s11 = ssub.s32 1, %s9
  %s12 = scalar_select 0, %s11, %s9
  $region1: #{line_evo_forward.1} parent=0
    #allocation2 [shape = 'u8[12288]{0}', space=vmem, size = 0x3000, scoped, tag = 'output window, operand 0, single buffered']
    #allocation3 [shape = 's32[1]{0}', space=sflag, size = 0x4, scoped, tag = 'scoped memory for line_evo_forward.1']
    #allocation4 [shape = 'u8[2048]{0}', space=vmem, size = 0x800, scoped, tag = 'output window, operand 1, single buffered']
    #allocation5 [shape = 's32[1]{0}', space=sflag, size = 0x4, scoped, tag = 'scoped memory for line_evo_forward.1']
    %13 = vsyncpa [#allocation3], 0
    %14 = vsyncpa [#allocation5], 0
    // Predicated region
    $region2: #{line_evo_forward.1} parent=1 // pred_check
      _
    $region3: #{line_evo_forward.1} parent=1 // pred_check_branch
      %16 = sbr.rel (0) target = $region5
    $region4: #{line_evo_forward.1} parent=1 // pred_region
      _
    $region5: #{line_evo_forward.1} parent=1 // pred_fallthru
      _
    // Predicated region
    $region6: #{line_evo_forward.1} parent=1 // pred_check
      _
    $region7: #{line_evo_forward.1} parent=1 // pred_check_branch
      %18 = sbr.rel (0) target = $region9
    $region8: #{line_evo_forward.1} parent=1 // pred_region
      _
    $region9: #{line_evo_forward.1} parent=1 // pred_fallthru
      _
    // Predicated region
    $region10: #{line_evo_forward.1} parent=1 // pred_check
      _
    $region11: #{line_evo_forward.1} parent=1 // pred_check_branch
      %20 = sbr.rel (0) target = $region13
    $region12: #{line_evo_forward.1} parent=1 // pred_region
      _
    $region13: #{line_evo_forward.1} parent=1 // pred_fallthru
      _
    // Predicated region
    $region14: #{line_evo_forward.1} parent=1 // pred_check
      _
    $region15: #{line_evo_forward.1} parent=1 // pred_check_branch
      %22 = sbr.rel (0) target = $region17
    $region16: #{line_evo_forward.1} parent=1 // pred_region
      _
    $region17: #{line_evo_forward.1} parent=1 // pred_fallthru
      _
    // Predicated region
    $region18: #{line_evo_forward.1} parent=1 // pred_check
      _
    $region19: #{line_evo_forward.1} parent=1 // pred_check_branch
      %24 = sbr.rel (0) target = $region21
    $region20: #{line_evo_forward.1} parent=1 // pred_region
      _
    $region21: #{line_evo_forward.1} parent=1 // pred_fallthru
      _
    // Predicated region
    $region22: #{line_evo_forward.1} parent=1 // pred_check
      _
    $region23: #{line_evo_forward.1} parent=1 // pred_check_branch
      %26 = sbr.rel (0) target = $region25
    $region24: #{line_evo_forward.1} parent=1 // pred_region
      _
    $region25: #{line_evo_forward.1} parent=1 // pred_fallthru
      _
    %v27 = vld [vmem:[%s2] sm:$0x1]
    %v28 = vld [vmem:[%s2 + $0x1] sm:$0x1]
    %v29 = vld [vmem:[%s2 + $0x2] sm:$0x1]
    %v30 = vld [vmem:[%s2 + $0x3] sm:$0x1]
    %v31 = vld [vmem:[%s0] sm:$0xff]
    %v32 = vld [vmem:[%s0 + $0x8] sm:$0xff]
    %v33 = vld [vmem:[%s1] sm:$0xff]
    %v34 = vld [vmem:[%s1 + $0x8] sm:$0xff]
    %v35 = vld [vmem:[%s1 + $0x10] sm:$0xff]
    %v36 = vld [vmem:[%s1 + $0x18] sm:$0xff]
    %v37 = vld [vmem:[%s1 + $0x20] sm:$0xff]
    %v38 = vld [vmem:[%s1 + $0x28] sm:$0xff]
    %v39 = vld [vmem:[%s1 + $0x30] sm:$0xff]
    %v40 = vld [vmem:[%s1 + $0x38] sm:$0xff]
    %v41 = vld [vmem:[%s1 + $0x40] sm:$0xff]
    %v42 = vld [vmem:[%s1 + $0x48] sm:$0xff]
    %v43 = vld [vmem:[%s1 + $0x50] sm:$0xff]
    %v44 = vld [vmem:[%s1 + $0x58] sm:$0xff]
    %v45 = vld [vmem:[%s1 + $0x60] sm:$0xff]
    %v46 = vld [vmem:[%s1 + $0x68] sm:$0xff]
    %v47 = vld [vmem:[%s1 + $0x70] sm:$0xff]
    %v48 = vld [vmem:[%s1 + $0x78] sm:$0xff]
    %v49 = vlaneseq
    %v50 = vshrl.u32 %v49, 7
    %v51 = vsub.s32 0, %v50
    %v52 = vrot.slane %v27, %v51
    %53 = vmatprep.subr.mxu0 0.0
    %54 = vmatpush1.msra.mxu0 %v33
    %55 = vmatprep.subr.mxu0 0.0
    %56 = vmatpush1.msra.mxu0 %v34
    %57 = vmatprep.subr.mxu0 0.0
    %58 = vmatpush1.msra.mxu0 %v35
    %59 = vmatprep.subr.mxu0 0.0
    %60 = vmatpush1.msra.mxu0 %v36
    %61 = vmatprep.subr.mxu0 0.0
    %62 = vmatpush1.msra.mxu0 %v37
    %63 = vmatprep.subr.mxu0 0.0
    %64 = vmatpush1.msra.mxu0 %v38
    %65 = vmatprep.subr.mxu0 0.0
    %66 = vmatpush1.msra.mxu0 %v39
    %67 = vmatprep.subr.mxu0 0.0
    %68 = vmatpush1.msra.mxu0 %v40
    %69 = vmatprep.subr.mxu0 0.0
    %70 = vmatpush1.msra.mxu0 %v41
    %71 = vmatprep.subr.mxu0 0.0
    %72 = vmatpush1.msra.mxu0 %v42
    %73 = vmatprep.subr.mxu0 0.0
    %74 = vmatpush1.msra.mxu0 %v43
    %75 = vmatprep.subr.mxu0 0.0
    %76 = vmatpush1.msra.mxu0 %v44
    %77 = vmatprep.subr.mxu0 0.0
    %78 = vmatpush1.msra.mxu0 %v45
    %79 = vmatprep.subr.mxu0 0.0
    %80 = vmatpush1.msra.mxu0 %v46
    %81 = vmatprep.subr.mxu0 0.0
    %82 = vmatpush1.msra.mxu0 %v47
    %83 = vmatprep.subr.mxu0 0.0
    %84 = vmatpush1.msra.mxu0 %v48
    %85 = vmatprep.subr.mxu0 0.0
    %86 = vmatpush1.msra.mxu0 0.0
    %87 = vmatprep.subr.mxu0 0.0
    %88 = vmatpush1.msra.mxu0 0.0
    %89 = vmatprep.subr.mxu0 0.0
    %90 = vmatpush1.msra.mxu0 0.0
    %91 = vmatprep.subr.mxu0 0.0
    %92 = vmatpush1.msra.mxu0 0.0
    %93 = vmatprep.subr.mxu0 0.0
    %94 = vmatpush1.msra.mxu0 0.0
    %95 = vmatprep.subr.mxu0 0.0
    %96 = vmatpush1.msra.mxu0 0.0
    %97 = vmatprep.subr.mxu0 0.0
    %98 = vmatpush1.msra.mxu0 0.0
    %99 = vmatprep.subr.mxu0 0.0
    %100 = vmatpush1.msra.mxu0 0.0
    %101 = vmatprep.subr.mxu0 0.0
    %102 = vmatpush1.msra.mxu0 0.0
    %103 = vmatprep.subr.mxu0 0.0
    %104 = vmatpush1.msra.mxu0 0.0
    %105 = vmatprep.subr.mxu0 0.0
    %106 = vmatpush1.msra.mxu0 0.0
    %107 = vmatprep.subr.mxu0 0.0
    %108 = vmatpush1.msra.mxu0 0.0
    %109 = vmatprep.subr.mxu0 0.0
    %110 = vmatpush1.msra.mxu0 0.0
    %111 = vmatprep.subr.mxu0 0.0
    %112 = vmatpush1.msra.mxu0 0.0
    %113 = vmatprep.subr.mxu0 0.0
    %114 = vmatpush1.msra.mxu0 0.0
    %115 = vmatprep.subr.mxu0 0.0
    %116 = vmatpush1.msra.mxu0 0.0
    %117 = vmatprep.mubr.f32.mxu0 0.0
    %118 = vmatmul.mubr.f32.gmra.mrb[0].mxu0 %v31
    %v119 = vpop.f32.mrb[0].mxu0
    %v120 = vadd.f32 %v52, %v119
    %v121 = vpop.f32.mrb[0].mxu0
    %122 = vmatprep.mubr.f32.mxu0 0.0
    %123 = vmatmul.mubr.f32.gmra.mrb[0].mxu0 %v32
    %v124 = vpop.f32.mrb[0].mxu0
    %v125 = vadd.f32 %v52, %v124
    %v126 = vpop.f32.mrb[0].mxu0
    %127 = vdwg.mxu0
    %v128 = vlaneseq
    %v129 = vand.u32 %v128, 127
    %v130 = vld [vmem:[%s3] sm:$0xff]
    %v131 = vld [vmem:[%s3 + $0x8] sm:$0xff]
    %v132 = vld [vmem:[%s3 + $0x10] sm:$0xff]
    %133 = vset.pattern.permute.xlu0 0
    %134 = vperm.xlu0 %133, %v130
    %v135 = vpop.permute.xlu0 %134
    %136 = vset.pattern.permute.xlu0 0
    %137 = vperm.xlu0 %136, %v131
    %v138 = vpop.permute.xlu0 %137
    %139 = vset.pattern.permute.xlu0 0
    %140 = vperm.xlu0 %139, %v132
    %v141 = vpop.permute.xlu0 %140
    %vm142 = vcmp.eq.s32.totalorder %v129, %v135
    %vm143 = vcmp.eq.s32.totalorder %v129, %v138
    %vm144 = vcmp.eq.s32.totalorder %v129, %v141
    %v145 = vsel %vm142, 1, 0
    %v146 = vsel %vm143, 1, 0
    %v147 = vsel %vm144, 1, 0
    %v148 = vcvt.s32.f32 %v145
    %v149 = vcvt.s32.f32 %v146
    %v150 = vcvt.s32.f32 %v147
    %v151 = vld [vmem:[%s4] sm:$0xff]
    %v152 = vld [vmem:[%s4 + $0x8] sm:$0xff]
    %v153 = vld [vmem:[%s4 + $0x10] sm:$0xff]
    %154 = vset.pattern.permute.xlu0 0
    %155 = vperm.xlu0 %154, %v151
    %v156 = vpop.permute.xlu0 %155
    %157 = vset.pattern.permute.xlu0 0
    %158 = vperm.xlu0 %157, %v152
    %v159 = vpop.permute.xlu0 %158
    %160 = vset.pattern.permute.xlu0 0
    %161 = vperm.xlu0 %160, %v153
    %v162 = vpop.permute.xlu0 %161
    %vm163 = vcmp.eq.s32.totalorder %v129, %v156
    %vm164 = vcmp.eq.s32.totalorder %v129, %v159
    %vm165 = vcmp.eq.s32.totalorder %v129, %v162
    %v166 = vsel %vm163, 1, 0
    %v167 = vsel %vm164, 1, 0
    %v168 = vsel %vm165, 1, 0
    %v169 = vcvt.s32.f32 %v166
    %v170 = vcvt.s32.f32 %v167
    %v171 = vcvt.s32.f32 %v168
    %v172 = vadd.f32 %v148, %v169
    %v173 = vadd.f32 %v149, %v170
    %v174 = vadd.f32 %v150, %v171
    %vm175 = vcmask 130048
    %v177 = vsel %vm175, %v172, 0
    %v180 = vsel %vm175, %v173, 0
    %v183 = vsel %vm175, %v174, 0
    %185 = vmatprep.subr.mxu0 0.0
    %v186 = vand.u32 %v120, 4294901760
    %187 = vmatpush1.msra.mxu0 %v186
    %188 = vmatprep.subr.mxu0 0.0
    %v189 = vand.u32 %v125, 4294901760
    %190 = vmatpush1.msra.mxu0 %v189
    %191 = vmatprep.subr.mxu0 0.0
    %192 = vmatpush1.msra.mxu0 0.0
    %193 = vmatprep.subr.mxu0 0.0
    %194 = vmatpush1.msra.mxu0 0.0
    %195 = vmatprep.subr.mxu0 0.0
    %196 = vmatpush1.msra.mxu0 0.0
    %197 = vmatprep.subr.mxu0 0.0
    %198 = vmatpush1.msra.mxu0 0.0
    %199 = vmatprep.subr.mxu0 0.0
    %200 = vmatpush1.msra.mxu0 0.0
    %201 = vmatprep.subr.mxu0 0.0
    %202 = vmatpush1.msra.mxu0 0.0
    %203 = vmatprep.subr.mxu0 0.0
    %204 = vmatpush1.msra.mxu0 0.0
    %205 = vmatprep.subr.mxu0 0.0
    %206 = vmatpush1.msra.mxu0 0.0
    %207 = vmatprep.subr.mxu0 0.0
    %208 = vmatpush1.msra.mxu0 0.0
    %209 = vmatprep.subr.mxu0 0.0
    %210 = vmatpush1.msra.mxu0 0.0
    %211 = vmatprep.subr.mxu0 0.0
    %212 = vmatpush1.msra.mxu0 0.0
    %213 = vmatprep.subr.mxu0 0.0
    %214 = vmatpush1.msra.mxu0 0.0
    %215 = vmatprep.subr.mxu0 0.0
    %216 = vmatpush1.msra.mxu0 0.0
    %217 = vmatprep.subr.mxu0 0.0
    %218 = vmatpush1.msra.mxu0 0.0
    %219 = vmatprep.subr.mxu0 0.0
    %220 = vmatpush1.msra.mxu0 0.0
    %221 = vmatprep.subr.mxu0 0.0
    %222 = vmatpush1.msra.mxu0 0.0
    %223 = vmatprep.subr.mxu0 0.0
    %224 = vmatpush1.msra.mxu0 0.0
    %225 = vmatprep.subr.mxu0 0.0
    %226 = vmatpush1.msra.mxu0 0.0
    %227 = vmatprep.subr.mxu0 0.0
    %228 = vmatpush1.msra.mxu0 0.0
    %229 = vmatprep.subr.mxu0 0.0
    %230 = vmatpush1.msra.mxu0 0.0
    %231 = vmatprep.subr.mxu0 0.0
    %232 = vmatpush1.msra.mxu0 0.0
    %233 = vmatprep.subr.mxu0 0.0
    %234 = vmatpush1.msra.mxu0 0.0
    %235 = vmatprep.subr.mxu0 0.0
    %236 = vmatpush1.msra.mxu0 0.0
    %237 = vmatprep.subr.mxu0 0.0
    %238 = vmatpush1.msra.mxu0 0.0
    %239 = vmatprep.subr.mxu0 0.0
    %240 = vmatpush1.msra.mxu0 0.0
    %241 = vmatprep.subr.mxu0 0.0
    %242 = vmatpush1.msra.mxu0 0.0
    %243 = vmatprep.subr.mxu0 0.0
    %244 = vmatpush1.msra.mxu0 0.0
    %245 = vmatprep.subr.mxu0 0.0
    %246 = vmatpush1.msra.mxu0 0.0
    %247 = vmatprep.subr.mxu0 0.0
    %248 = vmatpush1.msra.mxu0 0.0
    %249 = vmatprep.subr.mxu0 0.0
    %250 = vmatpush1.msra.mxu0 0.0
    %251 = vmatprep.mubr.f32.mxu0 0.0
    %v252 = vand.u32 %v177, 4294901760
    %v253 = vsub.f32 %v177, %v252
    %v254 = vand.u32 %v253, 4294901760
    %v255 = vsub.f32 %v253, %v254
    %v256 = vand.u32 %v255, 4294901760
    %257 = vmatmul.mubr.f32.gmra.mrb[0].mxu0 %v256
    %v258 = vpop.f32.mrb[0].mxu0
    %v259 = vadd.f32 0.0, %v258
    %v260 = vpop.f32.mrb[0].mxu0
    %261 = vmatprep.mubr.f32.mxu0 0.0
    %v262 = vand.u32 %v180, 4294901760
    %v263 = vsub.f32 %v180, %v262
    %v264 = vand.u32 %v263, 4294901760
    %v265 = vsub.f32 %v263, %v264
    %v266 = vand.u32 %v265, 4294901760
    %267 = vmatmul.mubr.f32.gmra.mrb[0].mxu0 %v266
    %v268 = vpop.f32.mrb[0].mxu0
    %v269 = vadd.f32 0.0, %v268
    %v270 = vpop.f32.mrb[0].mxu0
    %271 = vmatprep.mubr.f32.mxu0 0.0
    %v272 = vand.u32 %v183, 4294901760
    %v273 = vsub.f32 %v183, %v272
    %v274 = vand.u32 %v273, 4294901760
    %v275 = vsub.f32 %v273, %v274
    %v276 = vand.u32 %v275, 4294901760
    %277 = vmatmul.mubr.f32.gmra.mrb[0].mxu0 %v276
    %v278 = vpop.f32.mrb[0].mxu0
    %v279 = vadd.f32 0.0, %v278
    %v280 = vpop.f32.mrb[0].mxu0
    %281 = vdwg.mxu0
    %282 = vmatprep.subr.mxu0 0.0
    %v283 = vand.u32 %v120, 4294901760
    %v284 = vsub.f32 %v120, %v283
    %v285 = vand.u32 %v284, 4294901760
    %v286 = vsub.f32 %v284, %v285
    %v287 = vand.u32 %v286, 4294901760
    %288 = vmatpush1.msra.mxu0 %v287
    %289 = vmatprep.subr.mxu0 0.0
    %v290 = vand.u32 %v125, 4294901760
    %v291 = vsub.f32 %v125, %v290
    %v292 = vand.u32 %v291, 4294901760
    %v293 = vsub.f32 %v291, %v292
    %v294 = vand.u32 %v293, 4294901760
    %295 = vmatpush1.msra.mxu0 %v294
    %296 = vmatprep.subr.mxu0 0.0
    %297 = vmatpush1.msra.mxu0 0.0
    %298 = vmatprep.subr.mxu0 0.0
    %299 = vmatpush1.msra.mxu0 0.0
    %300 = vmatprep.subr.mxu0 0.0
    %301 = vmatpush1.msra.mxu0 0.0
    %302 = vmatprep.subr.mxu0 0.0
    %303 = vmatpush1.msra.mxu0 0.0
    %304 = vmatprep.subr.mxu0 0.0
    %305 = vmatpush1.msra.mxu0 0.0
    %306 = vmatprep.subr.mxu0 0.0
    %307 = vmatpush1.msra.mxu0 0.0
    %308 = vmatprep.subr.mxu0 0.0
    %309 = vmatpush1.msra.mxu0 0.0
    %310 = vmatprep.subr.mxu0 0.0
    %311 = vmatpush1.msra.mxu0 0.0
    %312 = vmatprep.subr.mxu0 0.0
    %313 = vmatpush1.msra.mxu0 0.0
    %314 = vmatprep.subr.mxu0 0.0
    %315 = vmatpush1.msra.mxu0 0.0
    %316 = vmatprep.subr.mxu0 0.0
    %317 = vmatpush1.msra.mxu0 0.0
    %318 = vmatprep.subr.mxu0 0.0
    %319 = vmatpush1.msra.mxu0 0.0
    %320 = vmatprep.subr.mxu0 0.0
    %321 = vmatpush1.msra.mxu0 0.0
    %322 = vmatprep.subr.mxu0 0.0
    %323 = vmatpush1.msra.mxu0 0.0
    %324 = vmatprep.subr.mxu0 0.0
    %325 = vmatpush1.msra.mxu0 0.0
    %326 = vmatprep.subr.mxu0 0.0
    %327 = vmatpush1.msra.mxu0 0.0
    %328 = vmatprep.subr.mxu0 0.0
    %329 = vmatpush1.msra.mxu0 0.0
    %330 = vmatprep.subr.mxu0 0.0
    %331 = vmatpush1.msra.mxu0 0.0
    %332 = vmatprep.subr.mxu0 0.0
    %333 = vmatpush1.msra.mxu0 0.0
    %334 = vmatprep.subr.mxu0 0.0
    %335 = vmatpush1.msra.mxu0 0.0
    %336 = vmatprep.subr.mxu0 0.0
    %337 = vmatpush1.msra.mxu0 0.0
    %338 = vmatprep.subr.mxu0 0.0
    %339 = vmatpush1.msra.mxu0 0.0
    %340 = vmatprep.subr.mxu0 0.0
    %341 = vmatpush1.msra.mxu0 0.0
    %342 = vmatprep.subr.mxu0 0.0
    %343 = vmatpush1.msra.mxu0 0.0
    %344 = vmatprep.subr.mxu0 0.0
    %345 = vmatpush1.msra.mxu0 0.0
    %346 = vmatprep.subr.mxu0 0.0
    %347 = vmatpush1.msra.mxu0 0.0
    %348 = vmatprep.subr.mxu0 0.0
    %349 = vmatpush1.msra.mxu0 0.0
    %350 = vmatprep.subr.mxu0 0.0
    %351 = vmatpush1.msra.mxu0 0.0
    %352 = vmatprep.subr.mxu0 0.0
    %353 = vmatpush1.msra.mxu0 0.0
    %354 = vmatprep.subr.mxu0 0.0
    %355 = vmatpush1.msra.mxu0 0.0
    %356 = vmatprep.mubr.f32.mxu0 0.0
    %v357 = vand.u32 %v177, 4294901760
    %358 = vmatmul.mubr.f32.gmra.mrb[0].mxu0 %v357
    %v359 = vpop.f32.mrb[0].mxu0
    %v360 = vadd.f32 %v259, %v359
    %v361 = vpop.f32.mrb[0].mxu0
    %362 = vmatprep.mubr.f32.mxu0 0.0
    %v363 = vand.u32 %v180, 4294901760
    %364 = vmatmul.mubr.f32.gmra.mrb[0].mxu0 %v363
    %v365 = vpop.f32.mrb[0].mxu0
    %v366 = vadd.f32 %v269, %v365
    %v367 = vpop.f32.mrb[0].mxu0
    %368 = vmatprep.mubr.f32.mxu0 0.0
    %v369 = vand.u32 %v183, 4294901760
    %370 = vmatmul.mubr.f32.gmra.mrb[0].mxu0 %v369
    %v371 = vpop.f32.mrb[0].mxu0
    %v372 = vadd.f32 %v279, %v371
    %v373 = vpop.f32.mrb[0].mxu0
    %374 = vdwg.mxu0
    %375 = vmatprep.subr.mxu0 0.0
    %v376 = vand.u32 %v120, 4294901760
    %v377 = vsub.f32 %v120, %v376
    %378 = vmatpush1.msra.mxu0 %v377
    %379 = vmatprep.subr.mxu0 0.0
    %v380 = vand.u32 %v125, 4294901760
    %v381 = vsub.f32 %v125, %v380
    %382 = vmatpush1.msra.mxu0 %v381
    %383 = vmatprep.subr.mxu0 0.0
    %384 = vmatpush1.msra.mxu0 0.0
    %385 = vmatprep.subr.mxu0 0.0
    %386 = vmatpush1.msra.mxu0 0.0
    %387 = vmatprep.subr.mxu0 0.0
    %388 = vmatpush1.msra.mxu0 0.0
    %389 = vmatprep.subr.mxu0 0.0
    %390 = vmatpush1.msra.mxu0 0.0
    %391 = vmatprep.subr.mxu0 0.0
    %392 = vmatpush1.msra.mxu0 0.0
    %393 = vmatprep.subr.mxu0 0.0
    %394 = vmatpush1.msra.mxu0 0.0
    %395 = vmatprep.subr.mxu0 0.0
    %396 = vmatpush1.msra.mxu0 0.0
    %397 = vmatprep.subr.mxu0 0.0
    %398 = vmatpush1.msra.mxu0 0.0
    %399 = vmatprep.subr.mxu0 0.0
    %400 = vmatpush1.msra.mxu0 0.0
    %401 = vmatprep.subr.mxu0 0.0
    %402 = vmatpush1.msra.mxu0 0.0
    %403 = vmatprep.subr.mxu0 0.0
    %404 = vmatpush1.msra.mxu0 0.0
    %405 = vmatprep.subr.mxu0 0.0
    %406 = vmatpush1.msra.mxu0 0.0
    %407 = vmatprep.subr.mxu0 0.0
    %408 = vmatpush1.msra.mxu0 0.0
    %409 = vmatprep.subr.mxu0 0.0
    %410 = vmatpush1.msra.mxu0 0.0
    %411 = vmatprep.subr.mxu0 0.0
    %412 = vmatpush1.msra.mxu0 0.0
    %413 = vmatprep.subr.mxu0 0.0
    %414 = vmatpush1.msra.mxu0 0.0
    %415 = vmatprep.subr.mxu0 0.0
    %416 = vmatpush1.msra.mxu0 0.0
    %417 = vmatprep.subr.mxu0 0.0
    %418 = vmatpush1.msra.mxu0 0.0
    %419 = vmatprep.subr.mxu0 0.0
    %420 = vmatpush1.msra.mxu0 0.0
    %421 = vmatprep.subr.mxu0 0.0
    %422 = vmatpush1.msra.mxu0 0.0
    %423 = vmatprep.subr.mxu0 0.0
    %424 = vmatpush1.msra.mxu0 0.0
    %425 = vmatprep.subr.mxu0 0.0
    %426 = vmatpush1.msra.mxu0 0.0
    %427 = vmatprep.subr.mxu0 0.0
    %428 = vmatpush1.msra.mxu0 0.0
    %429 = vmatprep.subr.mxu0 0.0
    %430 = vmatpush1.msra.mxu0 0.0
    %431 = vmatprep.subr.mxu0 0.0
    %432 = vmatpush1.msra.mxu0 0.0
    %433 = vmatprep.subr.mxu0 0.0
    %434 = vmatpush1.msra.mxu0 0.0
    %435 = vmatprep.subr.mxu0 0.0
    %436 = vmatpush1.msra.mxu0 0.0
    %437 = vmatprep.subr.mxu0 0.0
    %438 = vmatpush1.msra.mxu0 0.0
    %439 = vmatprep.subr.mxu0 0.0
    %440 = vmatpush1.msra.mxu0 0.0
    %441 = vmatprep.subr.mxu0 0.0
    %442 = vmatpush1.msra.mxu0 0.0
    %443 = vmatprep.mubr.f32.mxu0 0.0
    %v444 = vand.u32 %v177, 4294901760
    %v445 = vsub.f32 %v177, %v444
    %446 = vmatmul.mubr.f32.gmra.mrb[0].mxu0 %v445
    %v447 = vpop.f32.mrb[0].mxu0
    %v448 = vadd.f32 %v360, %v447
    %v449 = vpop.f32.mrb[0].mxu0
    %450 = vmatprep.mubr.f32.mxu0 0.0
    %v451 = vand.u32 %v180, 4294901760
    %v452 = vsub.f32 %v180, %v451
    %453 = vmatmul.mubr.f32.gmra.mrb[0].mxu0 %v452
    %v454 = vpop.f32.mrb[0].mxu0
    %v455 = vadd.f32 %v366, %v454
    %v456 = vpop.f32.mrb[0].mxu0
    %457 = vmatprep.mubr.f32.mxu0 0.0
    %v458 = vand.u32 %v183, 4294901760
    %v459 = vsub.f32 %v183, %v458
    %460 = vmatmul.mubr.f32.gmra.mrb[0].mxu0 %v459
    %v461 = vpop.f32.mrb[0].mxu0
    %v462 = vadd.f32 %v372, %v461
    %v463 = vpop.f32.mrb[0].mxu0
    %464 = vdwg.mxu0
    %465 = vmatprep.subr.mxu0 0.0
    %v466 = vand.u32 %v120, 4294901760
    %467 = vmatpush1.msra.mxu0 %v466
    %468 = vmatprep.subr.mxu0 0.0
    %v469 = vand.u32 %v125, 4294901760
    %470 = vmatpush1.msra.mxu0 %v469
    %471 = vmatprep.subr.mxu0 0.0
    %472 = vmatpush1.msra.mxu0 0.0
    %473 = vmatprep.subr.mxu0 0.0
    %474 = vmatpush1.msra.mxu0 0.0
    %475 = vmatprep.subr.mxu0 0.0
    %476 = vmatpush1.msra.mxu0 0.0
    %477 = vmatprep.subr.mxu0 0.0
    %478 = vmatpush1.msra.mxu0 0.0
    %479 = vmatprep.subr.mxu0 0.0
    %480 = vmatpush1.msra.mxu0 0.0
    %481 = vmatprep.subr.mxu0 0.0
    %482 = vmatpush1.msra.mxu0 0.0
    %483 = vmatprep.subr.mxu0 0.0
    %484 = vmatpush1.msra.mxu0 0.0
    %485 = vmatprep.subr.mxu0 0.0
    %486 = vmatpush1.msra.mxu0 0.0
    %487 = vmatprep.subr.mxu0 0.0
    %488 = vmatpush1.msra.mxu0 0.0
    %489 = vmatprep.subr.mxu0 0.0
    %490 = vmatpush1.msra.mxu0 0.0
    %491 = vmatprep.subr.mxu0 0.0
    %492 = vmatpush1.msra.mxu0 0.0
    %493 = vmatprep.subr.mxu0 0.0
    %494 = vmatpush1.msra.mxu0 0.0
    %495 = vmatprep.subr.mxu0 0.0
    %496 = vmatpush1.msra.mxu0 0.0
    %497 = vmatprep.subr.mxu0 0.0
    %498 = vmatpush1.msra.mxu0 0.0
    %499 = vmatprep.subr.mxu0 0.0
    %500 = vmatpush1.msra.mxu0 0.0
    %501 = vmatprep.subr.mxu0 0.0
    %502 = vmatpush1.msra.mxu0 0.0
    %503 = vmatprep.subr.mxu0 0.0
    %504 = vmatpush1.msra.mxu0 0.0
    %505 = vmatprep.subr.mxu0 0.0
    %506 = vmatpush1.msra.mxu0 0.0
    %507 = vmatprep.subr.mxu0 0.0
    %508 = vmatpush1.msra.mxu0 0.0
    %509 = vmatprep.subr.mxu0 0.0
    %510 = vmatpush1.msra.mxu0 0.0
    %511 = vmatprep.subr.mxu0 0.0
    %512 = vmatpush1.msra.mxu0 0.0
    %513 = vmatprep.subr.mxu0 0.0
    %514 = vmatpush1.msra.mxu0 0.0
    %515 = vmatprep.subr.mxu0 0.0
    %516 = vmatpush1.msra.mxu0 0.0
    %517 = vmatprep.subr.mxu0 0.0
    %518 = vmatpush1.msra.mxu0 0.0
    %519 = vmatprep.subr.mxu0 0.0
    %520 = vmatpush1.msra.mxu0 0.0
    %521 = vmatprep.subr.mxu0 0.0
    %522 = vmatpush1.msra.mxu0 0.0
    %523 = vmatprep.subr.mxu0 0.0
    %524 = vmatpush1.msra.mxu0 0.0
    %525 = vmatprep.subr.mxu0 0.0
    %526 = vmatpush1.msra.mxu0 0.0
    %527 = vmatprep.subr.mxu0 0.0
    %528 = vmatpush1.msra.mxu0 0.0
    %529 = vmatprep.subr.mxu0 0.0
    %530 = vmatpush1.msra.mxu0 0.0
    %531 = vmatprep.mubr.f32.mxu0 0.0
    %v532 = vand.u32 %v177, 4294901760
    %v533 = vsub.f32 %v177, %v532
    %v534 = vand.u32 %v533, 4294901760
    %535 = vmatmul.mubr.f32.gmra.mrb[0].mxu0 %v534
    %v536 = vpop.f32.mrb[0].mxu0
    %v537 = vadd.f32 %v448, %v536
    %v538 = vpop.f32.mrb[0].mxu0
    %539 = vmatprep.mubr.f32.mxu0 0.0
    %v540 = vand.u32 %v180, 4294901760
    %v541 = vsub.f32 %v180, %v540
    %v542 = vand.u32 %v541, 4294901760
    %543 = vmatmul.mubr.f32.gmra.mrb[0].mxu0 %v542
    %v544 = vpop.f32.mrb[0].mxu0
    %v545 = vadd.f32 %v455, %v544
    %v546 = vpop.f32.mrb[0].mxu0
    %547 = vmatprep.mubr.f32.mxu0 0.0
    %v548 = vand.u32 %v183, 4294901760
    %v549 = vsub.f32 %v183, %v548
    %v550 = vand.u32 %v549, 4294901760
    %551 = vmatmul.mubr.f32.gmra.mrb[0].mxu0 %v550
    %v552 = vpop.f32.mrb[0].mxu0
    %v553 = vadd.f32 %v462, %v552
    %v554 = vpop.f32.mrb[0].mxu0
    %555 = vdwg.mxu0
    %556 = vmatprep.subr.mxu0 0.0
    %v557 = vand.u32 %v120, 4294901760
    %v558 = vsub.f32 %v120, %v557
    %v559 = vand.u32 %v558, 4294901760
    %560 = vmatpush1.msra.mxu0 %v559
    %561 = vmatprep.subr.mxu0 0.0
    %v562 = vand.u32 %v125, 4294901760
    %v563 = vsub.f32 %v125, %v562
    %v564 = vand.u32 %v563, 4294901760
    %565 = vmatpush1.msra.mxu0 %v564
    %566 = vmatprep.subr.mxu0 0.0
    %567 = vmatpush1.msra.mxu0 0.0
    %568 = vmatprep.subr.mxu0 0.0
    %569 = vmatpush1.msra.mxu0 0.0
    %570 = vmatprep.subr.mxu0 0.0
    %571 = vmatpush1.msra.mxu0 0.0
    %572 = vmatprep.subr.mxu0 0.0
    %573 = vmatpush1.msra.mxu0 0.0
    %574 = vmatprep.subr.mxu0 0.0
    %575 = vmatpush1.msra.mxu0 0.0
    %576 = vmatprep.subr.mxu0 0.0
    %577 = vmatpush1.msra.mxu0 0.0
    %578 = vmatprep.subr.mxu0 0.0
    %579 = vmatpush1.msra.mxu0 0.0
    %580 = vmatprep.subr.mxu0 0.0
    %581 = vmatpush1.msra.mxu0 0.0
    %582 = vmatprep.subr.mxu0 0.0
    %583 = vmatpush1.msra.mxu0 0.0
    %584 = vmatprep.subr.mxu0 0.0
    %585 = vmatpush1.msra.mxu0 0.0
    %586 = vmatprep.subr.mxu0 0.0
    %587 = vmatpush1.msra.mxu0 0.0
    %588 = vmatprep.subr.mxu0 0.0
    %589 = vmatpush1.msra.mxu0 0.0
    %590 = vmatprep.subr.mxu0 0.0
    %591 = vmatpush1.msra.mxu0 0.0
    %592 = vmatprep.subr.mxu0 0.0
    %593 = vmatpush1.msra.mxu0 0.0
    %594 = vmatprep.subr.mxu0 0.0
    %595 = vmatpush1.msra.mxu0 0.0
    %596 = vmatprep.subr.mxu0 0.0
    %597 = vmatpush1.msra.mxu0 0.0
    %598 = vmatprep.subr.mxu0 0.0
    %599 = vmatpush1.msra.mxu0 0.0
    %600 = vmatprep.subr.mxu0 0.0
    %601 = vmatpush1.msra.mxu0 0.0
    %602 = vmatprep.subr.mxu0 0.0
    %603 = vmatpush1.msra.mxu0 0.0
    %604 = vmatprep.subr.mxu0 0.0
    %605 = vmatpush1.msra.mxu0 0.0
    %606 = vmatprep.subr.mxu0 0.0
    %607 = vmatpush1.msra.mxu0 0.0
    %608 = vmatprep.subr.mxu0 0.0
    %609 = vmatpush1.msra.mxu0 0.0
    %610 = vmatprep.subr.mxu0 0.0
    %611 = vmatpush1.msra.mxu0 0.0
    %612 = vmatprep.subr.mxu0 0.0
    %613 = vmatpush1.msra.mxu0 0.0
    %614 = vmatprep.subr.mxu0 0.0
    %615 = vmatpush1.msra.mxu0 0.0
    %616 = vmatprep.subr.mxu0 0.0
    %617 = vmatpush1.msra.mxu0 0.0
    %618 = vmatprep.subr.mxu0 0.0
    %619 = vmatpush1.msra.mxu0 0.0
    %620 = vmatprep.subr.mxu0 0.0
    %621 = vmatpush1.msra.mxu0 0.0
    %622 = vmatprep.subr.mxu0 0.0
    %623 = vmatpush1.msra.mxu0 0.0
    %624 = vmatprep.subr.mxu0 0.0
    %625 = vmatpush1.msra.mxu0 0.0
    %626 = vmatprep.mubr.f32.mxu0 0.0
    %v627 = vand.u32 %v177, 4294901760
    %628 = vmatmul.mubr.f32.gmra.mrb[0].mxu0 %v627
    %v629 = vpop.f32.mrb[0].mxu0
    %v630 = vadd.f32 %v537, %v629
    %v631 = vpop.f32.mrb[0].mxu0
    %632 = vmatprep.mubr.f32.mxu0 0.0
    %v633 = vand.u32 %v180, 4294901760
    %634 = vmatmul.mubr.f32.gmra.mrb[0].mxu0 %v633
    %v635 = vpop.f32.mrb[0].mxu0
    %v636 = vadd.f32 %v545, %v635
    %v637 = vpop.f32.mrb[0].mxu0
    %638 = vmatprep.mubr.f32.mxu0 0.0
    %v639 = vand.u32 %v183, 4294901760
    %640 = vmatmul.mubr.f32.gmra.mrb[0].mxu0 %v639
    %v641 = vpop.f32.mrb[0].mxu0
    %v642 = vadd.f32 %v553, %v641
    %v643 = vpop.f32.mrb[0].mxu0
    %644 = vdwg.mxu0
    %645 = vmatprep.subr.mxu0 0.0
    %v646 = vand.u32 %v120, 4294901760
    %647 = vmatpush1.msra.mxu0 %v646
    %648 = vmatprep.subr.mxu0 0.0
    %v649 = vand.u32 %v125, 4294901760
    %650 = vmatpush1.msra.mxu0 %v649
    %651 = vmatprep.subr.mxu0 0.0
    %652 = vmatpush1.msra.mxu0 0.0
    %653 = vmatprep.subr.mxu0 0.0
    %654 = vmatpush1.msra.mxu0 0.0
    %655 = vmatprep.subr.mxu0 0.0
    %656 = vmatpush1.msra.mxu0 0.0
    %657 = vmatprep.subr.mxu0 0.0
    %658 = vmatpush1.msra.mxu0 0.0
    %659 = vmatprep.subr.mxu0 0.0
    %660 = vmatpush1.msra.mxu0 0.0
    %661 = vmatprep.subr.mxu0 0.0
    %662 = vmatpush1.msra.mxu0 0.0
    %663 = vmatprep.subr.mxu0 0.0
    %664 = vmatpush1.msra.mxu0 0.0
    %665 = vmatprep.subr.mxu0 0.0
    %666 = vmatpush1.msra.mxu0 0.0
    %667 = vmatprep.subr.mxu0 0.0
    %668 = vmatpush1.msra.mxu0 0.0
    %669 = vmatprep.subr.mxu0 0.0
    %670 = vmatpush1.msra.mxu0 0.0
    %671 = vmatprep.subr.mxu0 0.0
    %672 = vmatpush1.msra.mxu0 0.0
    %673 = vmatprep.subr.mxu0 0.0
    %674 = vmatpush1.msra.mxu0 0.0
    %675 = vmatprep.subr.mxu0 0.0
    %676 = vmatpush1.msra.mxu0 0.0
    %677 = vmatprep.subr.mxu0 0.0
    %678 = vmatpush1.msra.mxu0 0.0
    %679 = vmatprep.subr.mxu0 0.0
    %680 = vmatpush1.msra.mxu0 0.0
    %681 = vmatprep.subr.mxu0 0.0
    %682 = vmatpush1.msra.mxu0 0.0
    %683 = vmatprep.subr.mxu0 0.0
    %684 = vmatpush1.msra.mxu0 0.0
    %685 = vmatprep.subr.mxu0 0.0
    %686 = vmatpush1.msra.mxu0 0.0
    %687 = vmatprep.subr.mxu0 0.0
    %688 = vmatpush1.msra.mxu0 0.0
    %689 = vmatprep.subr.mxu0 0.0
    %690 = vmatpush1.msra.mxu0 0.0
    %691 = vmatprep.subr.mxu0 0.0
    %692 = vmatpush1.msra.mxu0 0.0
    %693 = vmatprep.subr.mxu0 0.0
    %694 = vmatpush1.msra.mxu0 0.0
    %695 = vmatprep.subr.mxu0 0.0
    %696 = vmatpush1.msra.mxu0 0.0
    %697 = vmatprep.subr.mxu0 0.0
    %698 = vmatpush1.msra.mxu0 0.0
    %699 = vmatprep.subr.mxu0 0.0
    %700 = vmatpush1.msra.mxu0 0.0
    %701 = vmatprep.subr.mxu0 0.0
    %702 = vmatpush1.msra.mxu0 0.0
    %703 = vmatprep.subr.mxu0 0.0
    %704 = vmatpush1.msra.mxu0 0.0
    %705 = vmatprep.subr.mxu0 0.0
    %706 = vmatpush1.msra.mxu0 0.0
    %707 = vmatprep.subr.mxu0 0.0
    %708 = vmatpush1.msra.mxu0 0.0
    %709 = vmatprep.subr.mxu0 0.0
    %710 = vmatpush1.msra.mxu0 0.0
    %711 = vmatprep.mubr.f32.mxu0 0.0
    %v712 = vand.u32 %v177, 4294901760
    %713 = vmatmul.mubr.f32.gmra.mrb[0].mxu0 %v712
    %v714 = vpop.f32.mrb[0].mxu0
    %v715 = vadd.f32 %v630, %v714
    %v716 = vpop.f32.mrb[0].mxu0
    %717 = vmatprep.mubr.f32.mxu0 0.0
    %v718 = vand.u32 %v180, 4294901760
    %719 = vmatmul.mubr.f32.gmra.mrb[0].mxu0 %v718
    %v720 = vpop.f32.mrb[0].mxu0
    %v721 = vadd.f32 %v636, %v720
    %v722 = vpop.f32.mrb[0].mxu0
    %723 = vmatprep.mubr.f32.mxu0 0.0
    %v724 = vand.u32 %v183, 4294901760
    %725 = vmatmul.mubr.f32.gmra.mrb[0].mxu0 %v724
    %v726 = vpop.f32.mrb[0].mxu0
    %v727 = vadd.f32 %v642, %v726
    %v728 = vpop.f32.mrb[0].mxu0
    %729 = vdwg.mxu0
    %vm730 = vcmp.gt.f32.partialorder %v715, 0.0
    %vm731 = vcmp.gt.f32.partialorder %v721, 0.0
    %vm732 = vcmp.gt.f32.partialorder %v727, 0.0
    %v733 = vmin.f32 %v715, 0.0
    %v734 = vmin.f32 %v721, 0.0
    %v735 = vmin.f32 %v727, 0.0
    %v736 = vmul.f32 %v733, 1.442695
    %v737 = vpow.pop %v736
    %v738 = vmul.f32 %v734, 1.442695
    %v739 = vpow.pop %v738
    %v740 = vmul.f32 %v735, 1.442695
    %v741 = vpow.pop %v740
    %v742 = vsub.f32 %v737, 1.0
    %v743 = vsub.f32 %v739, 1.0
    %v744 = vsub.f32 %v741, 1.0
    %v745 = vsel %vm730, %v715, %v742
    %v746 = vsel %vm731, %v721, %v743
    %v747 = vsel %vm732, %v727, %v744
    %v748 = vlaneseq
    %v749 = vshrl.u32 %v748, 7
    %v750 = vsub.s32 0, %v749
    %v751 = vrot.slane %v28, %v750
    %v752 = vmul.f32 %v745, %v751
    %v753 = vmul.f32 %v746, %v751
    %v754 = vmul.f32 %v747, %v751
    %vm755 = vcmp.gt.f32.partialorder %v752, 0.0
    %vm756 = vcmp.gt.f32.partialorder %v753, 0.0
    %vm757 = vcmp.gt.f32.partialorder %v754, 0.0
    %v758 = vmin.f32 %v752, 0.0
    %v759 = vmin.f32 %v753, 0.0
    %v760 = vmin.f32 %v754, 0.0
    %v761 = vmul.f32 %v758, 1.442695
    %v762 = vpow.pop %v761
    %v763 = vmul.f32 %v759, 1.442695
    %v764 = vpow.pop %v763
    %v765 = vmul.f32 %v760, 1.442695
    %v766 = vpow.pop %v765
    %v767 = vsub.f32 %v762, 1.0
    %v768 = vsub.f32 %v764, 1.0
    %v769 = vsub.f32 %v766, 1.0
    %v770 = vsel %vm755, %v752, %v767
    %v771 = vsel %vm756, %v753, %v768
    %v772 = vsel %vm757, %v754, %v769
    %773 = vst [vmem:[#allocation2] sm:$0xff] %v770
    %774 = vst [vmem:[#allocation2 + $0x8] sm:$0xff] %v771
    %775 = vst [vmem:[#allocation2 + $0x10] sm:$0xff] %v772
    %v776 = vlaneseq
    %v777 = vshrl.u32 %v776, 7
    %v778 = vsub.s32 0, %v777
    %v779 = vrot.slane %v29, %v778
    %v780 = vmul.f32 %v770, %v779
    %v781 = vmul.f32 %v771, %v779
    %v782 = vmul.f32 %v772, %v779
    %783 = vadd.xlane.f32.xlu0 %v780
    %v784 = vpop.xlane.xlu0 %783
    %785 = vadd.xlane.f32.xlu0 %v781
    %v786 = vpop.xlane.xlu0 %785
    %787 = vadd.xlane.f32.xlu0 %v782
    %v788 = vpop.xlane.xlu0 %787
    %v789 = vlaneseq
    %v790 = vshrl.u32 %v789, 7
    %v791 = vsub.s32 0, %v790
    %v792 = vrot.slane %v30, %v791
    %v793 = vadd.f32 %v784, %v792
    %v794 = vadd.f32 %v786, %v792
    %v795 = vadd.f32 %v788, %v792
    %v796 = vxor.u32 %v793, 2147483648
    %v797 = vxor.u32 %v794, 2147483648
    %v798 = vxor.u32 %v795, 2147483648
    %v799 = vmul.f32 %v796, 1.442695
    %v800 = vpow.pop %v799
    %v801 = vmul.f32 %v797, 1.442695
    %v802 = vpow.pop %v801
    %v803 = vmul.f32 %v798, 1.442695
    %v804 = vpow.pop %v803
    %v805 = vadd.f32 %v800, 1.0
    %v806 = vadd.f32 %v802, 1.0
    %v807 = vadd.f32 %v804, 1.0
    %v808 = vrcp.pop %v805
    %v809 = vmul.f32 1.0, %v808
    %v810 = vrcp.pop %v806
    %v811 = vmul.f32 1.0, %v810
    %v812 = vrcp.pop %v807
    %v813 = vmul.f32 1.0, %v812
    %815 = vset.pattern.permute.xlu0 0
    %816 = vperm.xlu0 %815, %v809
    %v817 = vpop.permute.xlu0 %816
    %820 = vset.pattern.permute.xlu0 0
    %821 = vperm.xlu0 %820, %v811
    %v822 = vpop.permute.xlu0 %821
    %825 = vset.pattern.permute.xlu0 0
    %826 = vperm.xlu0 %825, %v813
    %v827 = vpop.permute.xlu0 %826
    %v829 = vmul.f32 %v770, %v817
    %v830 = vmul.f32 %v771, %v822
    %v831 = vmul.f32 %v772, %v827
    %v832 = vld [vmem:[%s5] sm:$0xff]
    %v833 = vld [vmem:[%s5 + $0x8] sm:$0xff]
    %v834 = vld [vmem:[%s5 + $0x10] sm:$0xff]
    %vm835 = vcmp.eq.s32.totalorder %v832, 0
    %vm836 = vcmp.eq.s32.totalorder %v833, 0
    %vm837 = vcmp.eq.s32.totalorder %v834, 0
    %v838 = vsel %vm835, 1, 0
    %v839 = vsel %vm836, 1, 0
    %v840 = vsel %vm837, 1, 0
    %841 = vset.pattern.permute.xlu0 0
    %842 = vperm.xlu0 %841, %v838
    %v843 = vpop.permute.xlu0 %842
    %844 = vset.pattern.permute.xlu0 0
    %845 = vperm.xlu0 %844, %v839
    %v846 = vpop.permute.xlu0 %845
    %847 = vset.pattern.permute.xlu0 0
    %848 = vperm.xlu0 %847, %v840
    %v849 = vpop.permute.xlu0 %848
    %vm850 = vcmp.eq.s32.totalorder %v843, 1
    %vm851 = vcmp.eq.s32.totalorder %v846, 1
    %vm852 = vcmp.eq.s32.totalorder %v849, 1
    %v853 = vsel %vm850, %v829, 0.0
    %v854 = vsel %vm851, %v830, 0.0
    %v855 = vsel %vm852, %v831, 0.0
    %v856 = vadd.f32 %v853, %v854
    %v857 = vadd.f32 %v856, %v855
    %v858 = vrot.slane %v857, 4
    %v859 = vadd.f32 %v857, %v858
    %v860 = vrot.slane %v859, 2
    %v861 = vadd.f32 %v859, %v860
    %v862 = vrot.slane %v861, 1
    %v863 = vadd.f32 %v861, %v862
    %v864 = vsel %vm850, %v770, -inf
    %v865 = vsel %vm851, %v771, -inf
    %v866 = vsel %vm852, %v772, -inf
    %v867 = vmax.f32 %v864, %v865
    %v868 = vmax.f32 %v867, %v866
    %v869 = vrot.slane %v868, 4
    %v870 = vmax.f32 %v868, %v869
    %v871 = vrot.slane %v870, 2
    %v872 = vmax.f32 %v870, %v871
    %v873 = vrot.slane %v872, 1
    %v874 = vmax.f32 %v872, %v873
    %vm875 = vcmp.eq.s32.totalorder %v832, 1
    %vm876 = vcmp.eq.s32.totalorder %v833, 1
    %vm877 = vcmp.eq.s32.totalorder %v834, 1
    %v878 = vsel %vm875, 1, 0
    %v879 = vsel %vm876, 1, 0
    %v880 = vsel %vm877, 1, 0
    %881 = vset.pattern.permute.xlu0 0
    %882 = vperm.xlu0 %881, %v878
    %v883 = vpop.permute.xlu0 %882
    %884 = vset.pattern.permute.xlu0 0
    %885 = vperm.xlu0 %884, %v879
    %v886 = vpop.permute.xlu0 %885
    %887 = vset.pattern.permute.xlu0 0
    %888 = vperm.xlu0 %887, %v880
    %v889 = vpop.permute.xlu0 %888
    %vm890 = vcmp.eq.s32.totalorder %v883, 1
    %vm891 = vcmp.eq.s32.totalorder %v886, 1
    %vm892 = vcmp.eq.s32.totalorder %v889, 1
    %v893 = vsel %vm890, %v829, 0.0
    %v894 = vsel %vm891, %v830, 0.0
    %v895 = vsel %vm892, %v831, 0.0
    %v896 = vadd.f32 %v893, %v894
    %v897 = vadd.f32 %v896, %v895
    %v898 = vrot.slane %v897, 4
    %v899 = vadd.f32 %v897, %v898
    %v900 = vrot.slane %v899, 2
    %v901 = vadd.f32 %v899, %v900
    %v902 = vrot.slane %v901, 1
    %v903 = vadd.f32 %v901, %v902
    %v904 = vsel %vm890, %v770, -inf
    %v905 = vsel %vm891, %v771, -inf
    %v906 = vsel %vm892, %v772, -inf
    %v907 = vmax.f32 %v904, %v905
    %v908 = vmax.f32 %v907, %v906
    %v909 = vrot.slane %v908, 4
    %v910 = vmax.f32 %v908, %v909
    %v911 = vrot.slane %v910, 2
    %v912 = vmax.f32 %v910, %v911
    %v913 = vrot.slane %v912, 1
    %v914 = vmax.f32 %v912, %v913
    %vm915 = vcmask 1040384
    %v916 = vsel %vm915, %v863, %v903
    %917 = vst [vmem:[#allocation4] sm:$0x3] %v916
    %v918 = vsel %vm915, %v874, %v914
    %919 = vst [vmem:[#allocation4 + $0x2] sm:$0x3] %v918
    // Predicated region
    $region26: #{line_evo_forward.1} parent=1 // pred_check
      _
    $region27: #{line_evo_forward.1} parent=1 // pred_check_branch
      %921 = sbr.rel (0) target = $region29
    $region28: #{line_evo_forward.1} parent=1 // pred_region
      %s923 = ssub.s32 384, 384
      %924 = vsyncadd [#allocation3], %s923
      %s925 = sshll.u32 [#allocation2], 4
      %s926 = int_to_ptr.vmem [resolvable:$true] %s925
      %931 = dma.vmem_to_hbm [thread:$0]  %s926, 384, %s6, [#allocation3], 128, 128, 8
    $region29: #{line_evo_forward.1} parent=1 // pred_fallthru
      _
    // Predicated region
    $region30: #{line_evo_forward.1} parent=1 // pred_check
      _
    $region31: #{line_evo_forward.1} parent=1 // pred_check_branch
      %933 = sbr.rel (0) target = $region33
    $region32: #{line_evo_forward.1} parent=1 // pred_region
      %s935 = ssub.s32 64, 64
      %936 = vsyncadd [#allocation5], %s935
      %s938 = sshll.u32 [#allocation4], 4
      %s939 = int_to_ptr.vmem [resolvable:$true] %s938
      %941 = dma.vmem_to_hbm [thread:$0]  %s939, 64, %s7, [#allocation5]
    $region33: #{line_evo_forward.1} parent=1 // pred_fallthru
      _
    // Predicated region
    $region34: #{line_evo_forward.1} parent=1 // pred_check
      _
    $region35: #{line_evo_forward.1} parent=1 // pred_check_branch
      %943 = sbr.rel (0) target = $region37
    $region36: #{line_evo_forward.1} parent=1 // pred_region
      %944 = dma.done [#allocation3], 384
    $region37: #{line_evo_forward.1} parent=1 // pred_fallthru
      _
    // Predicated region
    $region38: #{line_evo_forward.1} parent=1 // pred_check
      _
    $region39: #{line_evo_forward.1} parent=1 // pred_check_branch
      %946 = sbr.rel (0) target = $region41
    $region40: #{line_evo_forward.1} parent=1 // pred_region
      %947 = dma.done [#allocation5], 64
    $region41: #{line_evo_forward.1} parent=1 // pred_fallthru
      _
    %948 = vsyncpa [#allocation3], 1
    %949 = vsyncpa [#allocation5], 1

</llo_original>
